<compile_context>
chip_gen: v7x
topology: tpu7x:2x2x1
jax: 0.10.0
libtpu: 0.0.40
codegen_flags: <defaults>
</compile_context>

<pallas_src>
import functools

import jax
import jax.numpy as jnp
import numpy as np
from jax.experimental import pallas as pl
from jax.experimental.pallas import tpu as pltpu


def anfis_kernel(xt_ref, wsq_ref, wx_ref, k_ref, out_ref):
    """One batch tile.

    xt_ref : (D, TB)        transposed inputs -- batch on the LANE axis
    wsq_ref: (2*R_pad, D)   weights applied to x^2 (exponent rows, then linear)
    wx_ref : (2*R_pad, D)   weights applied to x
    k_ref  : (2*R_pad, 1)   per-row constants (exponent const / rule bias)
    out_ref: (1, TB)        lane-dense predictions for this batch tile
    """
    xt = xt_ref[...].astype(jnp.float32)   # upcast after load (no bf16 VPU on v5e)

    # Two tiny MXU matmuls; the contraction dim D is padded to 128/256 inside
    # the MXU anyway, so the split costs nothing and avoids any lane-axis
    # concatenate / relayout.  HIGHEST keeps full f32 matmul precision.
    z = (
        jnp.dot(wsq_ref[...], xt * xt,
                preferred_element_type=jnp.float32,
                precision=jax.lax.Precision.HIGHEST)
        + jnp.dot(wx_ref[...], xt,
                  preferred_element_type=jnp.float32,
                  precision=jax.lax.Precision.HIGHEST)
        + k_ref[...]
    )                                                   # (2*R_pad, TB)

    r_pad = k_ref.shape[0] // 2
    s = jnp.exp(z[:r_pad, :])                           # rule firing strengths
    wt = z[r_pad:, :]                                   # rule linear consequents

    # pred = sum_r norm_r * wt_r = (sum_r s_r*wt_r) / (sum_r s_r + 1e-8)
    numer = jnp.sum(s * wt, axis=0, keepdims=True)      # (1, TB)
    denom = jnp.sum(s, axis=0, keepdims=True) + 1e-8    # (1, TB)
    out_ref[...] = numer * pl.reciprocal(denom, approx=False)


def _round_up(n, m):
    return ((n + m - 1) // m) * m


@functools.partial(jax.jit, static_argnames=("block_batch", "x_dtype"))
def anfis_forward(x, centers, sigmas, coeffs, *,
                  block_batch=16384, x_dtype=jnp.float32):
    """Pallas ANFIS forward. x: (B, D) -> (B,) float32 predictions."""
    x = x.astype(jnp.float32)
    centers = centers.astype(jnp.float32)
    sigmas = sigmas.astype(jnp.float32)
    coeffs = coeffs.astype(jnp.float32)

    B, D = x.shape
    R = centers.shape[0]

    # ---- parameter prep (tiny, done once; removes all in-kernel divides,
    #      per-rule loops and transposes from the hot path) ----
    gamma = 1.0 / (2.0 * sigmas * sigmas)                              # (R, D)
    # -(x-c)^2*gamma = (-gamma)*x^2 + (2*gamma*c)*x + (-gamma*c^2)
    wsq_exp = -gamma                                                   # on x^2
    wx_exp = 2.0 * gamma * centers                                     # on x
    k_exp = -jnp.sum(gamma * centers * centers, axis=1, keepdims=True)  # (R,1)
    wsq_lin = jnp.zeros((R, D), jnp.float32)
    wx_lin = coeffs[:, :-1]
    k_lin = coeffs[:, -1:]

    # Pad rules to a multiple of 8 sublanes.  Padded rules have an exponent
    # constant of -1e30 -> exp() underflows to exactly 0 -> zero contribution.
    R_pad = max(8, _round_up(R, 8))
    pr = R_pad - R
    wsq = jnp.concatenate([jnp.pad(wsq_exp, ((0, pr), (0, 0))),
                           jnp.pad(wsq_lin, ((0, pr), (0, 0)))], axis=0)
    wx = jnp.concatenate([jnp.pad(wx_exp, ((0, pr), (0, 0))),
                          jnp.pad(wx_lin, ((0, pr), (0, 0)))], axis=0)
    k = jnp.concatenate([jnp.pad(k_exp, ((0, pr), (0, 0)), constant_values=-1e30),
                         jnp.pad(k_lin, ((0, pr), (0, 0)))], axis=0)   # (2R_pad,1)

    # ---- batch tiling: big lane-dense tiles; clamp so the grid keeps >= 2
    #      tiles whenever B > 128 (both TensorCores get work on v7x) ----
    TB = min(int(block_batch), _round_up(-(-B // 2), 128))
    TB = _round_up(max(TB, 128), 128)
    B_pad = _round_up(B, TB)
    n_tiles = B_pad // TB

    # Transposed (D, B) layout: batch on the lane axis end-to-end.  Optional
    # bf16 stream halves the dominant HBM read (compute stays f32 in-kernel).
    xt = jnp.pad(x.T, ((0, 0), (0, B_pad - B))).astype(x_dtype)        # (D, B_pad)

    out = pl.pallas_call(
        anfis_kernel,
        out_shape=jax.ShapeDtypeStruct((1, B_pad), jnp.float32),
        grid_spec=pltpu.PrefetchScalarGridSpec(
            num_scalar_prefetch=0,
            grid=(n_tiles,),
            in_specs=[
                pl.BlockSpec((D, TB), lambda i: (0, i)),
                pl.BlockSpec((2 * R_pad, D), lambda i: (0, 0)),
                pl.BlockSpec((2 * R_pad, D), lambda i: (0, 0)),
                pl.BlockSpec((2 * R_pad, 1), lambda i: (0, 0)),
            ],
            out_specs=pl.BlockSpec((1, TB), lambda i: (0, i)),
        ),
        compiler_params=pltpu.CompilerParams(
            dimension_semantics=("parallel",),
            vmem_limit_bytes=48 * 1024 * 1024,   # headroom even on v7x (64 MiB)
        ),
    )(xt, wsq, wx, k)

    return out.reshape(B_pad)[:B]


def anfis_reference(x, centers, sigmas, coeffs):
    """Pure-JAX reference mirroring the PyTorch forward (elementwise, so it is
    not subject to TPU default-matmul-precision downgrades)."""
    memberships = jnp.exp(
        -((x[:, None, :] - centers[None, :, :]) ** 2)
        / (2.0 * sigmas[None, :, :] ** 2)
    )                                                         # (B, R, D)
    strengths = jnp.prod(memberships, axis=2)                 # (B, R)
    normalized = strengths / (jnp.sum(strengths, axis=1, keepdims=True) + 1e-8)
    weighted = (jnp.sum(x[:, None, :] * coeffs[None, :, :-1], axis=-1)
                + coeffs[None, :, -1])                        # (B, R)
    return jnp.sum(normalized * weighted, axis=1)             # (B,)


if __name__ == "__main__":
    # Small deterministic problem: batch=300 (exercises batch padding and a
    # 2-tile grid), input_dim=4, num_rules=5 (exercises rule padding to 8).
    B, D, R = 300, 4, 5
    key = jax.random.PRNGKey(0)
    kx, kc, ks, kcoef = jax.random.split(key, 4)

    x = jax.random.normal(kx, (B, D), dtype=jnp.float32)
    centers = jax.random.normal(kc, (R, D), dtype=jnp.float32)
    sigmas = 0.5 + jax.random.uniform(ks, (R, D), dtype=jnp.float32)
    coeffs = 0.1 * jax.random.normal(kcoef, (R, D + 1), dtype=jnp.float32)

    ref = anfis_reference(x, centers, sigmas, coeffs)

    # Default f32 path: matches the f32 reference to 1e-5.
    pred = jax.block_until_ready(anfis_forward(x, centers, sigmas, coeffs))
    assert pred.shape == (B,)
    np.testing.assert_allclose(np.asarray(pred), np.asarray(ref),
                               rtol=1e-5, atol=1e-5)

    # bf16 x-stream path (halves the dominant HBM read); compare against the
    # reference fed the same bf16-quantized inputs (in-kernel math stays f32).
    pred_bf16 = jax.block_until_ready(
        anfis_forward(x, centers, sigmas, coeffs, x_dtype=jnp.bfloat16))
    ref_bf16 = anfis_reference(
        x.astype(jnp.bfloat16).astype(jnp.float32), centers, sigmas, coeffs)
    np.testing.assert_allclose(np.asarray(pred_bf16), np.asarray(ref_bf16),
                               rtol=1e-4, atol=1e-4)

    print("KERNEL_OK")
</pallas_src>

<mosaic_0001>
module attributes {stable_mosaic.version = 11 : i64} {
  func.func @anfis_kernel(%arg0: i32, %arg1: memref<4x256xf32, #tpu.memory_space<vmem>>, %arg2: memref<16x4xf32, #tpu.memory_space<vmem>>, %arg3: memref<16x4xf32, #tpu.memory_space<vmem>>, %arg4: memref<16x1xf32, #tpu.memory_space<vmem>>, %arg5: memref<1x256xf32, #tpu.memory_space<vmem>>) attributes {dimension_semantics = [#tpu.dimension_semantics<parallel>], iteration_bounds = array<i64: 2>, scalar_prefetch = 0 : i64, scratch_operands = 0 : i64, tpu.core_type = #tpu.core_type<tc>, window_params = [{transform_indices = @transform_0, window_bounds = array<i64: 4, 256>}, {pipeline_mode = #tpu.pipeline_mode<synchronous>, transform_indices = @transform_1, window_bounds = array<i64: 16, 4>}, {pipeline_mode = #tpu.pipeline_mode<synchronous>, transform_indices = @transform_2, window_bounds = array<i64: 16, 4>}, {pipeline_mode = #tpu.pipeline_mode<synchronous>, transform_indices = @transform_3, window_bounds = array<i64: 16, 1>}, {transform_indices = @transform_4, window_bounds = array<i64: 1, 256>}]} {
    %c0 = arith.constant 0 : index
    %c0_0 = arith.constant 0 : index
    %0 = vector.load %arg1[%c0, %c0_0] : memref<4x256xf32, #tpu.memory_space<vmem>>, vector<4x256xf32>
    %c0_1 = arith.constant 0 : index
    %c0_2 = arith.constant 0 : index
    %1 = vector.load %arg2[%c0_1, %c0_2] : memref<16x4xf32, #tpu.memory_space<vmem>>, vector<16x4xf32>
    %2 = arith.mulf %0, %0 : vector<4x256xf32>
    %cst = arith.constant dense<0.000000e+00> : vector<16x256xf32>
    %3 = tpu.matmul %1, %2, %cst {dimension_numbers = #tpu.dot_dimension_numbers<[1], [0], [0], [1], [0, 0, 1, 1], [], []>, precision = #tpu.contract_precision<fp32>} : vector<16x4xf32>, vector<4x256xf32>, vector<16x256xf32> -> vector<16x256xf32>
    %c0_3 = arith.constant 0 : index
    %c0_4 = arith.constant 0 : index
    %4 = vector.load %arg3[%c0_3, %c0_4] : memref<16x4xf32, #tpu.memory_space<vmem>>, vector<16x4xf32>
    %cst_5 = arith.constant dense<0.000000e+00> : vector<16x256xf32>
    %5 = tpu.matmul %4, %0, %cst_5 {dimension_numbers = #tpu.dot_dimension_numbers<[1], [0], [0], [1], [0, 0, 1, 1], [], []>, precision = #tpu.contract_precision<fp32>} : vector<16x4xf32>, vector<4x256xf32>, vector<16x256xf32> -> vector<16x256xf32>
    %6 = arith.addf %3, %5 : vector<16x256xf32>
    %c0_6 = arith.constant 0 : index
    %c0_7 = arith.constant 0 : index
    %7 = vector.load %arg4[%c0_6, %c0_7] : memref<16x1xf32, #tpu.memory_space<vmem>>, vector<16x1xf32>
    %8 = vector.broadcast %7 : vector<16x1xf32> to vector<16x256xf32>
    %9 = arith.addf %6, %8 : vector<16x256xf32>
    %10 = vector.extract_strided_slice %9 {offsets = [0, 0], sizes = [8, 256], strides = [1, 1]} : vector<16x256xf32> to vector<8x256xf32>
    %11 = math.exp %10 : vector<8x256xf32>
    %12 = vector.extract_strided_slice %9 {offsets = [8, 0], sizes = [8, 256], strides = [1, 1]} : vector<16x256xf32> to vector<8x256xf32>
    %13 = arith.mulf %11, %12 : vector<8x256xf32>
    %cst_8 = arith.constant dense<0.000000e+00> : vector<256xf32>
    %14 = vector.multi_reduction <add>, %13, %cst_8 [0] : vector<8x256xf32> to vector<256xf32>
    %15 = vector.shape_cast %14 : vector<256xf32> to vector<1x256xf32>
    %cst_9 = arith.constant dense<0.000000e+00> : vector<256xf32>
    %16 = vector.multi_reduction <add>, %11, %cst_9 [0] : vector<8x256xf32> to vector<256xf32>
    %17 = vector.shape_cast %16 : vector<256xf32> to vector<1x256xf32>
    %cst_10 = arith.constant 9.99999993E-9 : f32
    %18 = vector.broadcast %cst_10 : f32 to vector<1x256xf32>
    %19 = arith.addf %17, %18 : vector<1x256xf32>
    %20 = tpu.reciprocal %19 : vector<1x256xf32> -> vector<1x256xf32>
    %21 = arith.mulf %15, %20 : vector<1x256xf32>
    %c0_11 = arith.constant 0 : index
    %c0_12 = arith.constant 0 : index
    %22 = vector.load %arg5[%c0_11, %c0_12] : memref<1x256xf32, #tpu.memory_space<vmem>>, vector<1x256xf32>
    tpu.vector_store %arg5[%c0_11, %c0_12], %21 {strides = array<i32>} : memref<1x256xf32, #tpu.memory_space<vmem>>, vector<1x256xf32>,
    return
  }
  func.func @transform_0(%arg0: i32) -> (i32, i32) {
    %c0_i32 = arith.constant 0 : i32
    %c0_i32_0 = arith.constant 0 : i32
    return %c0_i32, %arg0 : i32, i32
  }
  func.func @transform_1(%arg0: i32) -> (i32, i32) {
    %c0_i32 = arith.constant 0 : i32
    %c0_i32_0 = arith.constant 0 : i32
    %c0_i32_1 = arith.constant 0 : i32
    return %c0_i32, %c0_i32_0 : i32, i32
  }
  func.func @transform_2(%arg0: i32) -> (i32, i32) {
    %c0_i32 = arith.constant 0 : i32
    %c0_i32_0 = arith.constant 0 : i32
    %c0_i32_1 = arith.constant 0 : i32
    return %c0_i32, %c0_i32_0 : i32, i32
  }
  func.func @transform_3(%arg0: i32) -> (i32, i32) {
    %c0_i32 = arith.constant 0 : i32
    %c0_i32_0 = arith.constant 0 : i32
    %c0_i32_1 = arith.constant 0 : i32
    return %c0_i32, %c0_i32_0 : i32, i32
  }
  func.func @transform_4(%arg0: i32) -> (i32, i32) {
    %c0_i32 = arith.constant 0 : i32
    %c0_i32_0 = arith.constant 0 : i32
    return %c0_i32, %arg0 : i32, i32
  }
}

</mosaic_0001>

<llo_original>
// kernel: anfis_forward.1
$region0: #{anfis_forward.1}
  #allocation0 [shape = 'u32[]', space=smem, size = 0x4, offset = 0x4, fixed_abs, tag = 'smem constant byte address 0x4 - core index']
  #allocation1 [shape = 'u32[144,128]{1,0:T(1,128)}', space=vmem, size = 0x12000, scoped, tag = 'internal scratch']
  %s0 = inlined_call_operand.vmem [shape: f32[4,512], index: 0, kind: input, shape index: {}]
  %s1 = inlined_call_operand.vmem [shape: f32[16,4], index: 1, kind: input, shape index: {}]
  %s2 = inlined_call_operand.vmem [shape: f32[16,4], index: 2, kind: input, shape index: {}]
  %s3 = inlined_call_operand.vmem [shape: f32[16,1], index: 3, kind: input, shape index: {}]
  %s4 = inlined_call_operand.vmem [shape: f32[1,512], index: 4, kind: output, shape index: {}]
  %s5 = sld [smem:[#allocation0]]
  $region49: #{anfis_forward.1} parent=0
    _
  %s7 = ssub.s32 1, %s5
  %s8 = scalar_select 0, %s7, %s5
  loop: start=0, step=1, limit=4
  $region2: #{anfis_forward.1} parent=0 // loop_pre_header
    _
  $region3: #{anfis_forward.1} parent=0 // loop_header
    %s10 = sphi 0, %s14
    %p11 = scmp.ge.s32.totalorder %s10, 4
    %s20 = sphi 0, %s22
    %s23 = sphi 0, %s20
    %s24 = sphi 0, %s23
    %s40 = sphi 0, %s24
    %s44 = sphi 0, %s44
    %s46 = sphi 0, %s44
    %s47 = sphi 0, %s46
    %s61 = sphi 0, %s47
    %s65 = sphi 0, %s65
    %s67 = sphi 0, %s65
    %s68 = sphi 0, %s67
    %s82 = sphi 0, %s68
    %s86 = sphi 0, %s86
    %s88 = sphi 0, %s86
    %s89 = sphi 0, %s88
    %s103 = sphi 0, %s89
    %s109 = sphi 0, %s111
    %s112 = sphi 0, %s109
    %s113 = sphi 0, %s112
    %s129 = sphi 0, %s113
  $region4: #{anfis_forward.1} parent=0 // loop_header_branch
    %13 = sbr.rel (%p11) target = $region8
  $region5: #{anfis_forward.1} parent=0 // loop_body
    %s15 = ssub.s32 %s10, 1
    %s16 = ssub.s32 %s10, 2
    %s17 = sadd.s32 %s10, 1
    %s18 = ssub.s32 %s10, %s17
    %p19 = scmp.eq.s32.totalorder %s18, 0
    %s21 = sadd.s32 %s20, 1
    %s22 = scalar_select %p19, %s20, %s21
    %p25 = pneg %p19
    %p26 = scmp.eq.s32.totalorder %s10, 1
    %p27 = por %p25, %p26
    %p28 = scmp.ne.s32.totalorder %s20, %s23
    %p29 = scmp.eq.s32.totalorder %s10, 0
    %p30 = por %p28, %p29
    %p31 = scmp.ne.s32.totalorder %s20, %s23
    %p32 = scmp.eq.s32.totalorder %s15, 1
    %p33 = por %p31, %p32
    %p34 = scmp.ne.s32.totalorder %s23, %s24
    %p35 = scmp.eq.s32.totalorder %s15, 0
    %p36 = por %p34, %p35
    %p37 = scmp.ne.s32.totalorder %s23, %s24
    %p38 = scmp.eq.s32.totalorder %s16, 1
    %p39 = por %p37, %p38
    %p41 = scmp.ne.s32.totalorder %s24, %s40
    %p42 = scmp.eq.s32.totalorder %s16, 0
    %p43 = por %p41, %p42
    %s45 = sadd.s32 %s44, 1
    %p48 = scmp.eq.s32.totalorder %s10, 1
    %p49 = scmp.ne.s32.totalorder %s44, %s46
    %p50 = scmp.eq.s32.totalorder %s10, 0
    %p51 = por %p49, %p50
    %p52 = scmp.ne.s32.totalorder %s44, %s46
    %p53 = scmp.eq.s32.totalorder %s15, 1
    %p54 = por %p52, %p53
    %p55 = scmp.ne.s32.totalorder %s46, %s47
    %p56 = scmp.eq.s32.totalorder %s15, 0
    %p57 = por %p55, %p56
    %p58 = scmp.ne.s32.totalorder %s46, %s47
    %p59 = scmp.eq.s32.totalorder %s16, 1
    %p60 = por %p58, %p59
    %p62 = scmp.ne.s32.totalorder %s47, %s61
    %p63 = scmp.eq.s32.totalorder %s16, 0
    %p64 = por %p62, %p63
    %s66 = sadd.s32 %s65, 1
    %p69 = scmp.eq.s32.totalorder %s10, 1
    %p70 = scmp.ne.s32.totalorder %s65, %s67
    %p71 = scmp.eq.s32.totalorder %s10, 0
    %p72 = por %p70, %p71
    %p73 = scmp.ne.s32.totalorder %s65, %s67
    %p74 = scmp.eq.s32.totalorder %s15, 1
    %p75 = por %p73, %p74
    %p76 = scmp.ne.s32.totalorder %s67, %s68
    %p77 = scmp.eq.s32.totalorder %s15, 0
    %p78 = por %p76, %p77
    %p79 = scmp.ne.s32.totalorder %s67, %s68
    %p80 = scmp.eq.s32.totalorder %s16, 1
    %p81 = por %p79, %p80
    %p83 = scmp.ne.s32.totalorder %s68, %s82
    %p84 = scmp.eq.s32.totalorder %s16, 0
    %p85 = por %p83, %p84
    %s87 = sadd.s32 %s86, 1
    %p90 = scmp.eq.s32.totalorder %s10, 1
    %p91 = scmp.ne.s32.totalorder %s86, %s88
    %p92 = scmp.eq.s32.totalorder %s10, 0
    %p93 = por %p91, %p92
    %p94 = scmp.ne.s32.totalorder %s86, %s88
    %p95 = scmp.eq.s32.totalorder %s15, 1
    %p96 = por %p94, %p95
    %p97 = scmp.ne.s32.totalorder %s88, %s89
    %p98 = scmp.eq.s32.totalorder %s15, 0
    %p99 = por %p97, %p98
    %p100 = scmp.ne.s32.totalorder %s88, %s89
    %p101 = scmp.eq.s32.totalorder %s16, 1
    %p102 = por %p100, %p101
    %p104 = scmp.ne.s32.totalorder %s89, %s103
    %p105 = scmp.eq.s32.totalorder %s16, 0
    %p106 = por %p104, %p105
    %s107 = ssub.s32 %s10, %s17
    %p108 = scmp.eq.s32.totalorder %s107, 0
    %s110 = sadd.s32 %s109, 1
    %s111 = scalar_select %p108, %s109, %s110
    %p114 = pneg %p108
    %p115 = scmp.eq.s32.totalorder %s10, 1
    %p116 = por %p114, %p115
    %p117 = scmp.ne.s32.totalorder %s109, %s112
    %p118 = scmp.eq.s32.totalorder %s10, 0
    %p119 = por %p117, %p118
    %p120 = scmp.ne.s32.totalorder %s109, %s112
    %p121 = scmp.eq.s32.totalorder %s15, 1
    %p122 = por %p120, %p121
    %p123 = scmp.ne.s32.totalorder %s112, %s113
    %p124 = scmp.eq.s32.totalorder %s15, 0
    %p125 = por %p123, %p124
    %p126 = scmp.ne.s32.totalorder %s112, %s113
    %p127 = scmp.eq.s32.totalorder %s16, 1
    %p128 = por %p126, %p127
    %p130 = scmp.ne.s32.totalorder %s113, %s129
    %p131 = scmp.eq.s32.totalorder %s16, 0
    %p132 = por %p130, %p131
    %p133 = scmp.le.s32.totalorder 1, %s10
    %p134 = scmp.lt.s32.totalorder %s10, 3
    %p135 = pnand %p133, %p134
    %p136 = pneg %p135
    // Predicated region
    $region9: #{anfis_forward.1} parent=5 // pred_check
      _
    $region10: #{anfis_forward.1} parent=5 // pred_check_branch
      %138 = sbr.rel (%p135) target = $region12
    $region11: #{anfis_forward.1} parent=5 // pred_region
      %s139 = ssub.s32 %s10, 1
      // Predicated region
      $region13: #{anfis_forward.1} parent=11 // pred_check
        %p140 = pneg %p57
      $region14: #{anfis_forward.1} parent=11 // pred_check_branch
        %142 = sbr.rel (%p140) target = $region16
      $region15: #{anfis_forward.1} parent=11 // pred_region
        _
      $region16: #{anfis_forward.1} parent=11 // pred_fallthru
        _
      // Predicated region
      $region17: #{anfis_forward.1} parent=11 // pred_check
        %p143 = pneg %p78
      $region18: #{anfis_forward.1} parent=11 // pred_check_branch
        %145 = sbr.rel (%p143) target = $region20
      $region19: #{anfis_forward.1} parent=11 // pred_region
        _
      $region20: #{anfis_forward.1} parent=11 // pred_fallthru
        _
      // Predicated region
      $region21: #{anfis_forward.1} parent=11 // pred_check
        %p146 = pneg %p99
      $region22: #{anfis_forward.1} parent=11 // pred_check_branch
        %148 = sbr.rel (%p146) target = $region24
      $region23: #{anfis_forward.1} parent=11 // pred_region
        _
      $region24: #{anfis_forward.1} parent=11 // pred_fallthru
        _
    $region12: #{anfis_forward.1} parent=5 // pred_fallthru
      _
    %p149 = scmp.lt.s32.totalorder %s10, 2
    // Predicated region
    $region25: #{anfis_forward.1} parent=5 // pred_check
      %p150 = pneg %p149
    $region26: #{anfis_forward.1} parent=5 // pred_check_branch
      %152 = sbr.rel (%p150) target = $region28
    $region27: #{anfis_forward.1} parent=5 // pred_region
      // Predicated region
      $region29: #{anfis_forward.1} parent=27 // pred_check
        %p153 = pneg %p30
      $region30: #{anfis_forward.1} parent=27 // pred_check_branch
        %155 = sbr.rel (%p153) target = $region32
      $region31: #{anfis_forward.1} parent=27 // pred_region
        %s156 = smul.u32 2, %s10
        %p157 = scmp.lt.s32.totalorder %s156, 3
        %s158 = scalar_select %p157, %s156, 3
        %s159 = smul.addr %s158, 4
        %s160 = scalar_lea.vmem %s0, %s159
        %s161 = smul.u32 2, %s10
      $region32: #{anfis_forward.1} parent=27 // pred_fallthru
        _
    $region28: #{anfis_forward.1} parent=5 // pred_fallthru
      _
    %p162 = scmp.le.s32.totalorder 1, %s10
    %p163 = scmp.lt.s32.totalorder %s10, 3
    %p164 = pnand %p162, %p163
    %p165 = pneg %p164
    // Predicated region
    $region33: #{anfis_forward.1} parent=5 // pred_check
      _
    $region34: #{anfis_forward.1} parent=5 // pred_check_branch
      %167 = sbr.rel (%p164) target = $region36
    $region35: #{anfis_forward.1} parent=5 // pred_region
      %s168 = ssub.s32 %s10, 1
      %s169 = smul.u32 2, %s15
      %p170 = scmp.lt.s32.totalorder %s169, 3
      %s171 = scalar_select %p170, %s169, 3
      %s172 = smul.addr %s171, 4
      %s173 = scalar_lea.vmem %s0, %s172
      %p174 = pneg %p36
      %p175 = pneg %p33
      %p176 = pneg %p57
      %p177 = pneg %p54
      %p178 = pneg %p78
      %p179 = pneg %p75
      %p180 = pneg %p99
      %p181 = pneg %p96
      %p182 = pneg %p125
      %p183 = pneg %p122
      %s184 = smul.u32 2, %s15
      %p185 = scmp.lt.s32.totalorder %s184, 3
      %s186 = scalar_select %p185, %s184, 3
      %s187 = scalar_lea.vmem %s4, %s186
      %s188 = smul.u32 2, %s15
      %p189 = scmp.lt.s32.totalorder %s188, 3
      %s190 = scalar_select %p189, %s188, 3
      %s191 = smul.addr %s190, 4
      %s192 = scalar_lea.vmem %s0, %s191
      %s193 = smul.u32 2, %s15
      %s194 = smul.u32 2, %s15
      %p195 = scmp.lt.s32.totalorder %s194, 3
      %s196 = scalar_select %p195, %s194, 3
      %s197 = scalar_lea.vmem %s4, %s196
      %s198 = smul.u32 2, %s15
      %v199 = vld [vmem:[%s192] sm:$0xff]
      %v200 = vld [vmem:[%s1] sm:$0xff]
      %v201 = vld [vmem:[%s1 + $0x8] sm:$0xff]
      %v202 = vmul.f32 %v199, %v199
      %v203 = vld [vmem:[%s2] sm:$0xff]
      %v204 = vld [vmem:[%s2 + $0x8] sm:$0xff]
      %v206 = vcombine.high %v199, %v199
      %vm207 = vcmask 31744
      %v209 = vsel %vm207, %v203, 0
      %v212 = vsel %vm207, %v204, 0
      %vm214 = vcmask 1043456
      %v215 = vsel %vm214, %v199, 0
      %v217 = vsel %vm214, %v206, 0
      %v219 = vand.u32 %v217, 4294901760
      %220 = vmatprep.subr.mxu0 %v219
      %v221 = vand.u32 %v215, 4294901760
      %222 = vmatpush1.msra.mxu0 %v221
      %223 = vmatprep.subr.mxu0 0.0
      %224 = vmatpush1.msra.mxu0 0.0
      %225 = vmatprep.subr.mxu0 0.0
      %226 = vmatpush1.msra.mxu0 0.0
      %227 = vmatprep.subr.mxu0 0.0
      %228 = vmatpush1.msra.mxu0 0.0
      %229 = vmatprep.subr.mxu0 0.0
      %230 = vmatpush1.msra.mxu0 0.0
      %231 = vmatprep.subr.mxu0 0.0
      %232 = vmatpush1.msra.mxu0 0.0
      %233 = vmatprep.subr.mxu0 0.0
      %234 = vmatpush1.msra.mxu0 0.0
      %235 = vmatprep.subr.mxu0 0.0
      %236 = vmatpush1.msra.mxu0 0.0
      %237 = vmatprep.subr.mxu0 0.0
      %238 = vmatpush1.msra.mxu0 0.0
      %239 = vmatprep.subr.mxu0 0.0
      %240 = vmatpush1.msra.mxu0 0.0
      %241 = vmatprep.subr.mxu0 0.0
      %242 = vmatpush1.msra.mxu0 0.0
      %243 = vmatprep.subr.mxu0 0.0
      %244 = vmatpush1.msra.mxu0 0.0
      %245 = vmatprep.subr.mxu0 0.0
      %246 = vmatpush1.msra.mxu0 0.0
      %247 = vmatprep.subr.mxu0 0.0
      %248 = vmatpush1.msra.mxu0 0.0
      %249 = vmatprep.subr.mxu0 0.0
      %250 = vmatpush1.msra.mxu0 0.0
      %251 = vmatprep.subr.mxu0 0.0
      %252 = vmatpush1.msra.mxu0 0.0
      %253 = vmatprep.subr.mxu0 0.0
      %254 = vmatpush1.msra.mxu0 0.0
      %255 = vmatprep.subr.mxu0 0.0
      %256 = vmatpush1.msra.mxu0 0.0
      %257 = vmatprep.subr.mxu0 0.0
      %258 = vmatpush1.msra.mxu0 0.0
      %259 = vmatprep.subr.mxu0 0.0
      %260 = vmatpush1.msra.mxu0 0.0
      %261 = vmatprep.subr.mxu0 0.0
      %262 = vmatpush1.msra.mxu0 0.0
      %263 = vmatprep.subr.mxu0 0.0
      %264 = vmatpush1.msra.mxu0 0.0
      %265 = vmatprep.subr.mxu0 0.0
      %266 = vmatpush1.msra.mxu0 0.0
      %267 = vmatprep.subr.mxu0 0.0
      %268 = vmatpush1.msra.mxu0 0.0
      %269 = vmatprep.subr.mxu0 0.0
      %270 = vmatpush1.msra.mxu0 0.0
      %271 = vmatprep.subr.mxu0 0.0
      %272 = vmatpush1.msra.mxu0 0.0
      %273 = vmatprep.subr.mxu0 0.0
      %274 = vmatpush1.msra.mxu0 0.0
      %275 = vmatprep.subr.mxu0 0.0
      %276 = vmatpush1.msra.mxu0 0.0
      %277 = vmatprep.subr.mxu0 0.0
      %278 = vmatpush1.msra.mxu0 0.0
      %279 = vmatprep.subr.mxu0 0.0
      %280 = vmatpush1.msra.mxu0 0.0
      %281 = vmatprep.subr.mxu0 0.0
      %282 = vmatpush1.msra.mxu0 0.0
      %283 = vmatprep.subr.mxu0 0.0
      %284 = vmatpush1.msra.mxu0 0.0
      %285 = vmatprep.mubr.f32.mxu0 0.0
      %v286 = vand.u32 %v209, 4294901760
      %v287 = vsub.f32 %v209, %v286
      %v288 = vand.u32 %v287, 4294901760
      %v289 = vsub.f32 %v287, %v288
      %v290 = vand.u32 %v289, 4294901760
      %291 = vmatmul.mubr.f32.gmra.mrb[0].mxu0 %v290
      %v292 = vpop.f32.mrb[0].mxu0
      %v293 = vadd.f32 0.0, %v292
      %v294 = vpop.f32.mrb[0].mxu0
      %v295 = vadd.f32 0.0, %v294
      %296 = vmatprep.mubr.f32.mxu0 0.0
      %v297 = vand.u32 %v212, 4294901760
      %v298 = vsub.f32 %v212, %v297
      %v299 = vand.u32 %v298, 4294901760
      %v300 = vsub.f32 %v298, %v299
      %v301 = vand.u32 %v300, 4294901760
      %302 = vmatmul.mubr.f32.gmra.mrb[0].mxu0 %v301
      %v303 = vpop.f32.mrb[0].mxu0
      %v304 = vadd.f32 0.0, %v303
      %v305 = vpop.f32.mrb[0].mxu0
      %v306 = vadd.f32 0.0, %v305
      %307 = vdwg.mxu0
      %v308 = vand.u32 %v217, 4294901760
      %v309 = vsub.f32 %v217, %v308
      %v310 = vand.u32 %v309, 4294901760
      %v311 = vsub.f32 %v309, %v310
      %v312 = vand.u32 %v311, 4294901760
      %313 = vmatprep.subr.mxu0 %v312
      %v314 = vand.u32 %v215, 4294901760
      %v315 = vsub.f32 %v215, %v314
      %v316 = vand.u32 %v315, 4294901760
      %v317 = vsub.f32 %v315, %v316
      %v318 = vand.u32 %v317, 4294901760
      %319 = vmatpush1.msra.mxu0 %v318
      %320 = vmatprep.subr.mxu0 0.0
      %321 = vmatpush1.msra.mxu0 0.0
      %322 = vmatprep.subr.mxu0 0.0
      %323 = vmatpush1.msra.mxu0 0.0
      %324 = vmatprep.subr.mxu0 0.0
      %325 = vmatpush1.msra.mxu0 0.0
      %326 = vmatprep.subr.mxu0 0.0
      %327 = vmatpush1.msra.mxu0 0.0
      %328 = vmatprep.subr.mxu0 0.0
      %329 = vmatpush1.msra.mxu0 0.0
      %330 = vmatprep.subr.mxu0 0.0
      %331 = vmatpush1.msra.mxu0 0.0
      %332 = vmatprep.subr.mxu0 0.0
      %333 = vmatpush1.msra.mxu0 0.0
      %334 = vmatprep.subr.mxu0 0.0
      %335 = vmatpush1.msra.mxu0 0.0
      %336 = vmatprep.subr.mxu0 0.0
      %337 = vmatpush1.msra.mxu0 0.0
      %338 = vmatprep.subr.mxu0 0.0
      %339 = vmatpush1.msra.mxu0 0.0
      %340 = vmatprep.subr.mxu0 0.0
      %341 = vmatpush1.msra.mxu0 0.0
      %342 = vmatprep.subr.mxu0 0.0
      %343 = vmatpush1.msra.mxu0 0.0
      %344 = vmatprep.subr.mxu0 0.0
      %345 = vmatpush1.msra.mxu0 0.0
      %346 = vmatprep.subr.mxu0 0.0
      %347 = vmatpush1.msra.mxu0 0.0
      %348 = vmatprep.subr.mxu0 0.0
      %349 = vmatpush1.msra.mxu0 0.0
      %350 = vmatprep.subr.mxu0 0.0
      %351 = vmatpush1.msra.mxu0 0.0
      %352 = vmatprep.subr.mxu0 0.0
      %353 = vmatpush1.msra.mxu0 0.0
      %354 = vmatprep.subr.mxu0 0.0
      %355 = vmatpush1.msra.mxu0 0.0
      %356 = vmatprep.subr.mxu0 0.0
      %357 = vmatpush1.msra.mxu0 0.0
      %358 = vmatprep.subr.mxu0 0.0
      %359 = vmatpush1.msra.mxu0 0.0
      %360 = vmatprep.subr.mxu0 0.0
      %361 = vmatpush1.msra.mxu0 0.0
      %362 = vmatprep.subr.mxu0 0.0
      %363 = vmatpush1.msra.mxu0 0.0
      %364 = vmatprep.subr.mxu0 0.0
      %365 = vmatpush1.msra.mxu0 0.0
      %366 = vmatprep.subr.mxu0 0.0
      %367 = vmatpush1.msra.mxu0 0.0
      %368 = vmatprep.subr.mxu0 0.0
      %369 = vmatpush1.msra.mxu0 0.0
      %370 = vmatprep.subr.mxu0 0.0
      %371 = vmatpush1.msra.mxu0 0.0
      %372 = vmatprep.subr.mxu0 0.0
      %373 = vmatpush1.msra.mxu0 0.0
      %374 = vmatprep.subr.mxu0 0.0
      %375 = vmatpush1.msra.mxu0 0.0
      %376 = vmatprep.subr.mxu0 0.0
      %377 = vmatpush1.msra.mxu0 0.0
      %378 = vmatprep.subr.mxu0 0.0
      %379 = vmatpush1.msra.mxu0 0.0
      %380 = vmatprep.subr.mxu0 0.0
      %381 = vmatpush1.msra.mxu0 0.0
      %382 = vmatprep.mubr.f32.mxu0 0.0
      %v383 = vand.u32 %v209, 4294901760
      %384 = vmatmul.mubr.f32.gmra.mrb[0].mxu0 %v383
      %v385 = vpop.f32.mrb[0].mxu0
      %v386 = vadd.f32 %v293, %v385
      %v387 = vpop.f32.mrb[0].mxu0
      %v388 = vadd.f32 %v295, %v387
      %389 = vmatprep.mubr.f32.mxu0 0.0
      %v390 = vand.u32 %v212, 4294901760
      %391 = vmatmul.mubr.f32.gmra.mrb[0].mxu0 %v390
      %v392 = vpop.f32.mrb[0].mxu0
      %v393 = vadd.f32 %v304, %v392
      %v394 = vpop.f32.mrb[0].mxu0
      %v395 = vadd.f32 %v306, %v394
      %396 = vdwg.mxu0
      %v397 = vand.u32 %v217, 4294901760
      %v398 = vsub.f32 %v217, %v397
      %399 = vmatprep.subr.mxu0 %v398
      %v400 = vand.u32 %v215, 4294901760
      %v401 = vsub.f32 %v215, %v400
      %402 = vmatpush1.msra.mxu0 %v401
      %403 = vmatprep.subr.mxu0 0.0
      %404 = vmatpush1.msra.mxu0 0.0
      %405 = vmatprep.subr.mxu0 0.0
      %406 = vmatpush1.msra.mxu0 0.0
      %407 = vmatprep.subr.mxu0 0.0
      %408 = vmatpush1.msra.mxu0 0.0
      %409 = vmatprep.subr.mxu0 0.0
      %410 = vmatpush1.msra.mxu0 0.0
      %411 = vmatprep.subr.mxu0 0.0
      %412 = vmatpush1.msra.mxu0 0.0
      %413 = vmatprep.subr.mxu0 0.0
      %414 = vmatpush1.msra.mxu0 0.0
      %415 = vmatprep.subr.mxu0 0.0
      %416 = vmatpush1.msra.mxu0 0.0
      %417 = vmatprep.subr.mxu0 0.0
      %418 = vmatpush1.msra.mxu0 0.0
      %419 = vmatprep.subr.mxu0 0.0
      %420 = vmatpush1.msra.mxu0 0.0
      %421 = vmatprep.subr.mxu0 0.0
      %422 = vmatpush1.msra.mxu0 0.0
      %423 = vmatprep.subr.mxu0 0.0
      %424 = vmatpush1.msra.mxu0 0.0
      %425 = vmatprep.subr.mxu0 0.0
      %426 = vmatpush1.msra.mxu0 0.0
      %427 = vmatprep.subr.mxu0 0.0
      %428 = vmatpush1.msra.mxu0 0.0
      %429 = vmatprep.subr.mxu0 0.0
      %430 = vmatpush1.msra.mxu0 0.0
      %431 = vmatprep.subr.mxu0 0.0
      %432 = vmatpush1.msra.mxu0 0.0
      %433 = vmatprep.subr.mxu0 0.0
      %434 = vmatpush1.msra.mxu0 0.0
      %435 = vmatprep.subr.mxu0 0.0
      %436 = vmatpush1.msra.mxu0 0.0
      %437 = vmatprep.subr.mxu0 0.0
      %438 = vmatpush1.msra.mxu0 0.0
      %439 = vmatprep.subr.mxu0 0.0
      %440 = vmatpush1.msra.mxu0 0.0
      %441 = vmatprep.subr.mxu0 0.0
      %442 = vmatpush1.msra.mxu0 0.0
      %443 = vmatprep.subr.mxu0 0.0
      %444 = vmatpush1.msra.mxu0 0.0
      %445 = vmatprep.subr.mxu0 0.0
      %446 = vmatpush1.msra.mxu0 0.0
      %447 = vmatprep.subr.mxu0 0.0
      %448 = vmatpush1.msra.mxu0 0.0
      %449 = vmatprep.subr.mxu0 0.0
      %450 = vmatpush1.msra.mxu0 0.0
      %451 = vmatprep.subr.mxu0 0.0
      %452 = vmatpush1.msra.mxu0 0.0
      %453 = vmatprep.subr.mxu0 0.0
      %454 = vmatpush1.msra.mxu0 0.0
      %455 = vmatprep.subr.mxu0 0.0
      %456 = vmatpush1.msra.mxu0 0.0
      %457 = vmatprep.subr.mxu0 0.0
      %458 = vmatpush1.msra.mxu0 0.0
      %459 = vmatprep.subr.mxu0 0.0
      %460 = vmatpush1.msra.mxu0 0.0
      %461 = vmatprep.subr.mxu0 0.0
      %462 = vmatpush1.msra.mxu0 0.0
      %463 = vmatprep.subr.mxu0 0.0
      %464 = vmatpush1.msra.mxu0 0.0
      %465 = vmatprep.mubr.f32.mxu0 0.0
      %v466 = vand.u32 %v209, 4294901760
      %v467 = vsub.f32 %v209, %v466
      %468 = vmatmul.mubr.f32.gmra.mrb[0].mxu0 %v467
      %v469 = vpop.f32.mrb[0].mxu0
      %v470 = vadd.f32 %v386, %v469
      %v471 = vpop.f32.mrb[0].mxu0
      %v472 = vadd.f32 %v388, %v471
      %473 = vmatprep.mubr.f32.mxu0 0.0
      %v474 = vand.u32 %v212, 4294901760
      %v475 = vsub.f32 %v212, %v474
      %476 = vmatmul.mubr.f32.gmra.mrb[0].mxu0 %v475
      %v477 = vpop.f32.mrb[0].mxu0
      %v478 = vadd.f32 %v393, %v477
      %v479 = vpop.f32.mrb[0].mxu0
      %v480 = vadd.f32 %v395, %v479
      %481 = vdwg.mxu0
      %v482 = vand.u32 %v217, 4294901760
      %483 = vmatprep.subr.mxu0 %v482
      %v484 = vand.u32 %v215, 4294901760
      %485 = vmatpush1.msra.mxu0 %v484
      %486 = vmatprep.subr.mxu0 0.0
      %487 = vmatpush1.msra.mxu0 0.0
      %488 = vmatprep.subr.mxu0 0.0
      %489 = vmatpush1.msra.mxu0 0.0
      %490 = vmatprep.subr.mxu0 0.0
      %491 = vmatpush1.msra.mxu0 0.0
      %492 = vmatprep.subr.mxu0 0.0
      %493 = vmatpush1.msra.mxu0 0.0
      %494 = vmatprep.subr.mxu0 0.0
      %495 = vmatpush1.msra.mxu0 0.0
      %496 = vmatprep.subr.mxu0 0.0
      %497 = vmatpush1.msra.mxu0 0.0
      %498 = vmatprep.subr.mxu0 0.0
      %499 = vmatpush1.msra.mxu0 0.0
      %500 = vmatprep.subr.mxu0 0.0
      %501 = vmatpush1.msra.mxu0 0.0
      %502 = vmatprep.subr.mxu0 0.0
      %503 = vmatpush1.msra.mxu0 0.0
      %504 = vmatprep.subr.mxu0 0.0
      %505 = vmatpush1.msra.mxu0 0.0
      %506 = vmatprep.subr.mxu0 0.0
      %507 = vmatpush1.msra.mxu0 0.0
      %508 = vmatprep.subr.mxu0 0.0
      %509 = vmatpush1.msra.mxu0 0.0
      %510 = vmatprep.subr.mxu0 0.0
      %511 = vmatpush1.msra.mxu0 0.0
      %512 = vmatprep.subr.mxu0 0.0
      %513 = vmatpush1.msra.mxu0 0.0
      %514 = vmatprep.subr.mxu0 0.0
      %515 = vmatpush1.msra.mxu0 0.0
      %516 = vmatprep.subr.mxu0 0.0
      %517 = vmatpush1.msra.mxu0 0.0
      %518 = vmatprep.subr.mxu0 0.0
      %519 = vmatpush1.msra.mxu0 0.0
      %520 = vmatprep.subr.mxu0 0.0
      %521 = vmatpush1.msra.mxu0 0.0
      %522 = vmatprep.subr.mxu0 0.0
      %523 = vmatpush1.msra.mxu0 0.0
      %524 = vmatprep.subr.mxu0 0.0
      %525 = vmatpush1.msra.mxu0 0.0
      %526 = vmatprep.subr.mxu0 0.0
      %527 = vmatpush1.msra.mxu0 0.0
      %528 = vmatprep.subr.mxu0 0.0
      %529 = vmatpush1.msra.mxu0 0.0
      %530 = vmatprep.subr.mxu0 0.0
      %531 = vmatpush1.msra.mxu0 0.0
      %532 = vmatprep.subr.mxu0 0.0
      %533 = vmatpush1.msra.mxu0 0.0
      %534 = vmatprep.subr.mxu0 0.0
      %535 = vmatpush1.msra.mxu0 0.0
      %536 = vmatprep.subr.mxu0 0.0
      %537 = vmatpush1.msra.mxu0 0.0
      %538 = vmatprep.subr.mxu0 0.0
      %539 = vmatpush1.msra.mxu0 0.0
      %540 = vmatprep.subr.mxu0 0.0
      %541 = vmatpush1.msra.mxu0 0.0
      %542 = vmatprep.subr.mxu0 0.0
      %543 = vmatpush1.msra.mxu0 0.0
      %544 = vmatprep.subr.mxu0 0.0
      %545 = vmatpush1.msra.mxu0 0.0
      %546 = vmatprep.subr.mxu0 0.0
      %547 = vmatpush1.msra.mxu0 0.0
      %548 = vmatprep.mubr.f32.mxu0 0.0
      %v549 = vand.u32 %v209, 4294901760
      %v550 = vsub.f32 %v209, %v549
      %v551 = vand.u32 %v550, 4294901760
      %552 = vmatmul.mubr.f32.gmra.mrb[0].mxu0 %v551
      %v553 = vpop.f32.mrb[0].mxu0
      %v554 = vadd.f32 %v470, %v553
      %v555 = vpop.f32.mrb[0].mxu0
      %v556 = vadd.f32 %v472, %v555
      %557 = vmatprep.mubr.f32.mxu0 0.0
      %v558 = vand.u32 %v212, 4294901760
      %v559 = vsub.f32 %v212, %v558
      %v560 = vand.u32 %v559, 4294901760
      %561 = vmatmul.mubr.f32.gmra.mrb[0].mxu0 %v560
      %v562 = vpop.f32.mrb[0].mxu0
      %v563 = vadd.f32 %v478, %v562
      %v564 = vpop.f32.mrb[0].mxu0
      %v565 = vadd.f32 %v480, %v564
      %566 = vdwg.mxu0
      %v567 = vand.u32 %v217, 4294901760
      %v568 = vsub.f32 %v217, %v567
      %v569 = vand.u32 %v568, 4294901760
      %570 = vmatprep.subr.mxu0 %v569
      %v571 = vand.u32 %v215, 4294901760
      %v572 = vsub.f32 %v215, %v571
      %v573 = vand.u32 %v572, 4294901760
      %574 = vmatpush1.msra.mxu0 %v573
      %575 = vmatprep.subr.mxu0 0.0
      %576 = vmatpush1.msra.mxu0 0.0
      %577 = vmatprep.subr.mxu0 0.0
      %578 = vmatpush1.msra.mxu0 0.0
      %579 = vmatprep.subr.mxu0 0.0
      %580 = vmatpush1.msra.mxu0 0.0
      %581 = vmatprep.subr.mxu0 0.0
      %582 = vmatpush1.msra.mxu0 0.0
      %583 = vmatprep.subr.mxu0 0.0
      %584 = vmatpush1.msra.mxu0 0.0
      %585 = vmatprep.subr.mxu0 0.0
      %586 = vmatpush1.msra.mxu0 0.0
      %587 = vmatprep.subr.mxu0 0.0
      %588 = vmatpush1.msra.mxu0 0.0
      %589 = vmatprep.subr.mxu0 0.0
      %590 = vmatpush1.msra.mxu0 0.0
      %591 = vmatprep.subr.mxu0 0.0
      %592 = vmatpush1.msra.mxu0 0.0
      %593 = vmatprep.subr.mxu0 0.0
      %594 = vmatpush1.msra.mxu0 0.0
      %595 = vmatprep.subr.mxu0 0.0
      %596 = vmatpush1.msra.mxu0 0.0
      %597 = vmatprep.subr.mxu0 0.0
      %598 = vmatpush1.msra.mxu0 0.0
      %599 = vmatprep.subr.mxu0 0.0
      %600 = vmatpush1.msra.mxu0 0.0
      %601 = vmatprep.subr.mxu0 0.0
      %602 = vmatpush1.msra.mxu0 0.0
      %603 = vmatprep.subr.mxu0 0.0
      %604 = vmatpush1.msra.mxu0 0.0
      %605 = vmatprep.subr.mxu0 0.0
      %606 = vmatpush1.msra.mxu0 0.0
      %607 = vmatprep.subr.mxu0 0.0
      %608 = vmatpush1.msra.mxu0 0.0
      %609 = vmatprep.subr.mxu0 0.0
      %610 = vmatpush1.msra.mxu0 0.0
      %611 = vmatprep.subr.mxu0 0.0
      %612 = vmatpush1.msra.mxu0 0.0
      %613 = vmatprep.subr.mxu0 0.0
      %614 = vmatpush1.msra.mxu0 0.0
      %615 = vmatprep.subr.mxu0 0.0
      %616 = vmatpush1.msra.mxu0 0.0
      %617 = vmatprep.subr.mxu0 0.0
      %618 = vmatpush1.msra.mxu0 0.0
      %619 = vmatprep.subr.mxu0 0.0
      %620 = vmatpush1.msra.mxu0 0.0
      %621 = vmatprep.subr.mxu0 0.0
      %622 = vmatpush1.msra.mxu0 0.0
      %623 = vmatprep.subr.mxu0 0.0
      %624 = vmatpush1.msra.mxu0 0.0
      %625 = vmatprep.subr.mxu0 0.0
      %626 = vmatpush1.msra.mxu0 0.0
      %627 = vmatprep.subr.mxu0 0.0
      %628 = vmatpush1.msra.mxu0 0.0
      %629 = vmatprep.subr.mxu0 0.0
      %630 = vmatpush1.msra.mxu0 0.0
      %631 = vmatprep.subr.mxu0 0.0
      %632 = vmatpush1.msra.mxu0 0.0
      %633 = vmatprep.subr.mxu0 0.0
      %634 = vmatpush1.msra.mxu0 0.0
      %635 = vmatprep.subr.mxu0 0.0
      %636 = vmatpush1.msra.mxu0 0.0
      %637 = vmatprep.mubr.f32.mxu0 0.0
      %v638 = vand.u32 %v209, 4294901760
      %639 = vmatmul.mubr.f32.gmra.mrb[0].mxu0 %v638
      %v640 = vpop.f32.mrb[0].mxu0
      %v641 = vadd.f32 %v554, %v640
      %v642 = vpop.f32.mrb[0].mxu0
      %v643 = vadd.f32 %v556, %v642
      %644 = vmatprep.mubr.f32.mxu0 0.0
      %v645 = vand.u32 %v212, 4294901760
      %646 = vmatmul.mubr.f32.gmra.mrb[0].mxu0 %v645
      %v647 = vpop.f32.mrb[0].mxu0
      %v648 = vadd.f32 %v563, %v647
      %v649 = vpop.f32.mrb[0].mxu0
      %v650 = vadd.f32 %v565, %v649
      %651 = vdwg.mxu0
      %v652 = vand.u32 %v217, 4294901760
      %653 = vmatprep.subr.mxu0 %v652
      %v654 = vand.u32 %v215, 4294901760
      %655 = vmatpush1.msra.mxu0 %v654
      %656 = vmatprep.subr.mxu0 0.0
      %657 = vmatpush1.msra.mxu0 0.0
      %658 = vmatprep.subr.mxu0 0.0
      %659 = vmatpush1.msra.mxu0 0.0
      %660 = vmatprep.subr.mxu0 0.0
      %661 = vmatpush1.msra.mxu0 0.0
      %662 = vmatprep.subr.mxu0 0.0
      %663 = vmatpush1.msra.mxu0 0.0
      %664 = vmatprep.subr.mxu0 0.0
      %665 = vmatpush1.msra.mxu0 0.0
      %666 = vmatprep.subr.mxu0 0.0
      %667 = vmatpush1.msra.mxu0 0.0
      %668 = vmatprep.subr.mxu0 0.0
      %669 = vmatpush1.msra.mxu0 0.0
      %670 = vmatprep.subr.mxu0 0.0
      %671 = vmatpush1.msra.mxu0 0.0
      %672 = vmatprep.subr.mxu0 0.0
      %673 = vmatpush1.msra.mxu0 0.0
      %674 = vmatprep.subr.mxu0 0.0
      %675 = vmatpush1.msra.mxu0 0.0
      %676 = vmatprep.subr.mxu0 0.0
      %677 = vmatpush1.msra.mxu0 0.0
      %678 = vmatprep.subr.mxu0 0.0
      %679 = vmatpush1.msra.mxu0 0.0
      %680 = vmatprep.subr.mxu0 0.0
      %681 = vmatpush1.msra.mxu0 0.0
      %682 = vmatprep.subr.mxu0 0.0
      %683 = vmatpush1.msra.mxu0 0.0
      %684 = vmatprep.subr.mxu0 0.0
      %685 = vmatpush1.msra.mxu0 0.0
      %686 = vmatprep.subr.mxu0 0.0
      %687 = vmatpush1.msra.mxu0 0.0
      %688 = vmatprep.subr.mxu0 0.0
      %689 = vmatpush1.msra.mxu0 0.0
      %690 = vmatprep.subr.mxu0 0.0
      %691 = vmatpush1.msra.mxu0 0.0
      %692 = vmatprep.subr.mxu0 0.0
      %693 = vmatpush1.msra.mxu0 0.0
      %694 = vmatprep.subr.mxu0 0.0
      %695 = vmatpush1.msra.mxu0 0.0
      %696 = vmatprep.subr.mxu0 0.0
      %697 = vmatpush1.msra.mxu0 0.0
      %698 = vmatprep.subr.mxu0 0.0
      %699 = vmatpush1.msra.mxu0 0.0
      %700 = vmatprep.subr.mxu0 0.0
      %701 = vmatpush1.msra.mxu0 0.0
      %702 = vmatprep.subr.mxu0 0.0
      %703 = vmatpush1.msra.mxu0 0.0
      %704 = vmatprep.subr.mxu0 0.0
      %705 = vmatpush1.msra.mxu0 0.0
      %706 = vmatprep.subr.mxu0 0.0
      %707 = vmatpush1.msra.mxu0 0.0
      %708 = vmatprep.subr.mxu0 0.0
      %709 = vmatpush1.msra.mxu0 0.0
      %710 = vmatprep.subr.mxu0 0.0
      %711 = vmatpush1.msra.mxu0 0.0
      %712 = vmatprep.subr.mxu0 0.0
      %713 = vmatpush1.msra.mxu0 0.0
      %714 = vmatprep.subr.mxu0 0.0
      %715 = vmatpush1.msra.mxu0 0.0
      %716 = vmatprep.subr.mxu0 0.0
      %717 = vmatpush1.msra.mxu0 0.0
      %718 = vmatprep.mubr.f32.mxu0 0.0
      %v719 = vand.u32 %v209, 4294901760
      %720 = vmatmul.mubr.f32.gmra.mrb[0].mxu0 %v719
      %v721 = vpop.f32.mrb[0].mxu0
      %v722 = vadd.f32 %v641, %v721
      %v723 = vpop.f32.mrb[0].mxu0
      %v724 = vadd.f32 %v643, %v723
      %725 = vmatprep.mubr.f32.mxu0 0.0
      %v726 = vand.u32 %v212, 4294901760
      %727 = vmatmul.mubr.f32.gmra.mrb[0].mxu0 %v726
      %v728 = vpop.f32.mrb[0].mxu0
      %v729 = vadd.f32 %v648, %v728
      %v730 = vpop.f32.mrb[0].mxu0
      %v731 = vadd.f32 %v650, %v730
      %732 = vdwg.mxu0
      %v734 = vcombine.high %v202, %v202
      %v736 = vsel %vm207, %v200, 0
      %v739 = vsel %vm207, %v201, 0
      %v741 = vsel %vm214, %v202, 0
      %v743 = vsel %vm214, %v734, 0
      %v745 = vand.u32 %v743, 4294901760
      %746 = vmatprep.subr.mxu0 %v745
      %v747 = vand.u32 %v741, 4294901760
      %748 = vmatpush1.msra.mxu0 %v747
      %749 = vmatprep.subr.mxu0 0.0
      %750 = vmatpush1.msra.mxu0 0.0
      %751 = vmatprep.subr.mxu0 0.0
      %752 = vmatpush1.msra.mxu0 0.0
      %753 = vmatprep.subr.mxu0 0.0
      %754 = vmatpush1.msra.mxu0 0.0
      %755 = vmatprep.subr.mxu0 0.0
      %756 = vmatpush1.msra.mxu0 0.0
      %757 = vmatprep.subr.mxu0 0.0
      %758 = vmatpush1.msra.mxu0 0.0
      %759 = vmatprep.subr.mxu0 0.0
      %760 = vmatpush1.msra.mxu0 0.0
      %761 = vmatprep.subr.mxu0 0.0
      %762 = vmatpush1.msra.mxu0 0.0
      %763 = vmatprep.subr.mxu0 0.0
      %764 = vmatpush1.msra.mxu0 0.0
      %765 = vmatprep.subr.mxu0 0.0
      %766 = vmatpush1.msra.mxu0 0.0
      %767 = vmatprep.subr.mxu0 0.0
      %768 = vmatpush1.msra.mxu0 0.0
      %769 = vmatprep.subr.mxu0 0.0
      %770 = vmatpush1.msra.mxu0 0.0
      %771 = vmatprep.subr.mxu0 0.0
      %772 = vmatpush1.msra.mxu0 0.0
      %773 = vmatprep.subr.mxu0 0.0
      %774 = vmatpush1.msra.mxu0 0.0
      %775 = vmatprep.subr.mxu0 0.0
      %776 = vmatpush1.msra.mxu0 0.0
      %777 = vmatprep.subr.mxu0 0.0
      %778 = vmatpush1.msra.mxu0 0.0
      %779 = vmatprep.subr.mxu0 0.0
      %780 = vmatpush1.msra.mxu0 0.0
      %781 = vmatprep.subr.mxu0 0.0
      %782 = vmatpush1.msra.mxu0 0.0
      %783 = vmatprep.subr.mxu0 0.0
      %784 = vmatpush1.msra.mxu0 0.0
      %785 = vmatprep.subr.mxu0 0.0
      %786 = vmatpush1.msra.mxu0 0.0
      %787 = vmatprep.subr.mxu0 0.0
      %788 = vmatpush1.msra.mxu0 0.0
      %789 = vmatprep.subr.mxu0 0.0
      %790 = vmatpush1.msra.mxu0 0.0
      %791 = vmatprep.subr.mxu0 0.0
      %792 = vmatpush1.msra.mxu0 0.0
      %793 = vmatprep.subr.mxu0 0.0
      %794 = vmatpush1.msra.mxu0 0.0
      %795 = vmatprep.subr.mxu0 0.0
      %796 = vmatpush1.msra.mxu0 0.0
      %797 = vmatprep.subr.mxu0 0.0
      %798 = vmatpush1.msra.mxu0 0.0
      %799 = vmatprep.subr.mxu0 0.0
      %800 = vmatpush1.msra.mxu0 0.0
      %801 = vmatprep.subr.mxu0 0.0
      %802 = vmatpush1.msra.mxu0 0.0
      %803 = vmatprep.subr.mxu0 0.0
      %804 = vmatpush1.msra.mxu0 0.0
      %805 = vmatprep.subr.mxu0 0.0
      %806 = vmatpush1.msra.mxu0 0.0
      %807 = vmatprep.subr.mxu0 0.0
      %808 = vmatpush1.msra.mxu0 0.0
      %809 = vmatprep.subr.mxu0 0.0
      %810 = vmatpush1.msra.mxu0 0.0
      %811 = vmatprep.mubr.f32.mxu0 0.0
      %v812 = vand.u32 %v736, 4294901760
      %v813 = vsub.f32 %v736, %v812
      %v814 = vand.u32 %v813, 4294901760
      %v815 = vsub.f32 %v813, %v814
      %v816 = vand.u32 %v815, 4294901760
      %817 = vmatmul.mubr.f32.gmra.mrb[0].mxu0 %v816
      %v818 = vpop.f32.mrb[0].mxu0
      %v819 = vadd.f32 %v722, %v818
      %v820 = vpop.f32.mrb[0].mxu0
      %v821 = vadd.f32 %v724, %v820
      %822 = vmatprep.mubr.f32.mxu0 0.0
      %v823 = vand.u32 %v739, 4294901760
      %v824 = vsub.f32 %v739, %v823
      %v825 = vand.u32 %v824, 4294901760
      %v826 = vsub.f32 %v824, %v825
      %v827 = vand.u32 %v826, 4294901760
      %828 = vmatmul.mubr.f32.gmra.mrb[0].mxu0 %v827
      %v829 = vpop.f32.mrb[0].mxu0
      %v830 = vadd.f32 %v729, %v829
      %v831 = vpop.f32.mrb[0].mxu0
      %v832 = vadd.f32 %v731, %v831
      %833 = vdwg.mxu0
      %v834 = vand.u32 %v743, 4294901760
      %v835 = vsub.f32 %v743, %v834
      %v836 = vand.u32 %v835, 4294901760
      %v837 = vsub.f32 %v835, %v836
      %v838 = vand.u32 %v837, 4294901760
      %839 = vmatprep.subr.mxu0 %v838
      %v840 = vand.u32 %v741, 4294901760
      %v841 = vsub.f32 %v741, %v840
      %v842 = vand.u32 %v841, 4294901760
      %v843 = vsub.f32 %v841, %v842
      %v844 = vand.u32 %v843, 4294901760
      %845 = vmatpush1.msra.mxu0 %v844
      %846 = vmatprep.subr.mxu0 0.0
      %847 = vmatpush1.msra.mxu0 0.0
      %848 = vmatprep.subr.mxu0 0.0
      %849 = vmatpush1.msra.mxu0 0.0
      %850 = vmatprep.subr.mxu0 0.0
      %851 = vmatpush1.msra.mxu0 0.0
      %852 = vmatprep.subr.mxu0 0.0
      %853 = vmatpush1.msra.mxu0 0.0
      %854 = vmatprep.subr.mxu0 0.0
      %855 = vmatpush1.msra.mxu0 0.0
      %856 = vmatprep.subr.mxu0 0.0
      %857 = vmatpush1.msra.mxu0 0.0
      %858 = vmatprep.subr.mxu0 0.0
      %859 = vmatpush1.msra.mxu0 0.0
      %860 = vmatprep.subr.mxu0 0.0
      %861 = vmatpush1.msra.mxu0 0.0
      %862 = vmatprep.subr.mxu0 0.0
      %863 = vmatpush1.msra.mxu0 0.0
      %864 = vmatprep.subr.mxu0 0.0
      %865 = vmatpush1.msra.mxu0 0.0
      %866 = vmatprep.subr.mxu0 0.0
      %867 = vmatpush1.msra.mxu0 0.0
      %868 = vmatprep.subr.mxu0 0.0
      %869 = vmatpush1.msra.mxu0 0.0
      %870 = vmatprep.subr.mxu0 0.0
      %871 = vmatpush1.msra.mxu0 0.0
      %872 = vmatprep.subr.mxu0 0.0
      %873 = vmatpush1.msra.mxu0 0.0
      %874 = vmatprep.subr.mxu0 0.0
      %875 = vmatpush1.msra.mxu0 0.0
      %876 = vmatprep.subr.mxu0 0.0
      %877 = vmatpush1.msra.mxu0 0.0
      %878 = vmatprep.subr.mxu0 0.0
      %879 = vmatpush1.msra.mxu0 0.0
      %880 = vmatprep.subr.mxu0 0.0
      %881 = vmatpush1.msra.mxu0 0.0
      %882 = vmatprep.subr.mxu0 0.0
      %883 = vmatpush1.msra.mxu0 0.0
      %884 = vmatprep.subr.mxu0 0.0
      %885 = vmatpush1.msra.mxu0 0.0
      %886 = vmatprep.subr.mxu0 0.0
      %887 = vmatpush1.msra.mxu0 0.0
      %888 = vmatprep.subr.mxu0 0.0
      %889 = vmatpush1.msra.mxu0 0.0
      %890 = vmatprep.subr.mxu0 0.0
      %891 = vmatpush1.msra.mxu0 0.0
      %892 = vmatprep.subr.mxu0 0.0
      %893 = vmatpush1.msra.mxu0 0.0
      %894 = vmatprep.subr.mxu0 0.0
      %895 = vmatpush1.msra.mxu0 0.0
      %896 = vmatprep.subr.mxu0 0.0
      %897 = vmatpush1.msra.mxu0 0.0
      %898 = vmatprep.subr.mxu0 0.0
      %899 = vmatpush1.msra.mxu0 0.0
      %900 = vmatprep.subr.mxu0 0.0
      %901 = vmatpush1.msra.mxu0 0.0
      %902 = vmatprep.subr.mxu0 0.0
      %903 = vmatpush1.msra.mxu0 0.0
      %904 = vmatprep.subr.mxu0 0.0
      %905 = vmatpush1.msra.mxu0 0.0
      %906 = vmatprep.subr.mxu0 0.0
      %907 = vmatpush1.msra.mxu0 0.0
      %908 = vmatprep.mubr.f32.mxu0 0.0
      %v909 = vand.u32 %v736, 4294901760
      %910 = vmatmul.mubr.f32.gmra.mrb[0].mxu0 %v909
      %v911 = vpop.f32.mrb[0].mxu0
      %v912 = vadd.f32 %v819, %v911
      %v913 = vpop.f32.mrb[0].mxu0
      %v914 = vadd.f32 %v821, %v913
      %915 = vmatprep.mubr.f32.mxu0 0.0
      %v916 = vand.u32 %v739, 4294901760
      %917 = vmatmul.mubr.f32.gmra.mrb[0].mxu0 %v916
      %v918 = vpop.f32.mrb[0].mxu0
      %v919 = vadd.f32 %v830, %v918
      %v920 = vpop.f32.mrb[0].mxu0
      %v921 = vadd.f32 %v832, %v920
      %922 = vdwg.mxu0
      %v923 = vand.u32 %v743, 4294901760
      %v924 = vsub.f32 %v743, %v923
      %925 = vmatprep.subr.mxu0 %v924
      %v926 = vand.u32 %v741, 4294901760
      %v927 = vsub.f32 %v741, %v926
      %928 = vmatpush1.msra.mxu0 %v927
      %929 = vmatprep.subr.mxu0 0.0
      %930 = vmatpush1.msra.mxu0 0.0
      %931 = vmatprep.subr.mxu0 0.0
      %932 = vmatpush1.msra.mxu0 0.0
      %933 = vmatprep.subr.mxu0 0.0
      %934 = vmatpush1.msra.mxu0 0.0
      %935 = vmatprep.subr.mxu0 0.0
      %936 = vmatpush1.msra.mxu0 0.0
      %937 = vmatprep.subr.mxu0 0.0
      %938 = vmatpush1.msra.mxu0 0.0
      %939 = vmatprep.subr.mxu0 0.0
      %940 = vmatpush1.msra.mxu0 0.0
      %941 = vmatprep.subr.mxu0 0.0
      %942 = vmatpush1.msra.mxu0 0.0
      %943 = vmatprep.subr.mxu0 0.0
      %944 = vmatpush1.msra.mxu0 0.0
      %945 = vmatprep.subr.mxu0 0.0
      %946 = vmatpush1.msra.mxu0 0.0
      %947 = vmatprep.subr.mxu0 0.0
      %948 = vmatpush1.msra.mxu0 0.0
      %949 = vmatprep.subr.mxu0 0.0
      %950 = vmatpush1.msra.mxu0 0.0
      %951 = vmatprep.subr.mxu0 0.0
      %952 = vmatpush1.msra.mxu0 0.0
      %953 = vmatprep.subr.mxu0 0.0
      %954 = vmatpush1.msra.mxu0 0.0
      %955 = vmatprep.subr.mxu0 0.0
      %956 = vmatpush1.msra.mxu0 0.0
      %957 = vmatprep.subr.mxu0 0.0
      %958 = vmatpush1.msra.mxu0 0.0
      %959 = vmatprep.subr.mxu0 0.0
      %960 = vmatpush1.msra.mxu0 0.0
      %961 = vmatprep.subr.mxu0 0.0
      %962 = vmatpush1.msra.mxu0 0.0
      %963 = vmatprep.subr.mxu0 0.0
      %964 = vmatpush1.msra.mxu0 0.0
      %965 = vmatprep.subr.mxu0 0.0
      %966 = vmatpush1.msra.mxu0 0.0
      %967 = vmatprep.subr.mxu0 0.0
      %968 = vmatpush1.msra.mxu0 0.0
      %969 = vmatprep.subr.mxu0 0.0
      %970 = vmatpush1.msra.mxu0 0.0
      %971 = vmatprep.subr.mxu0 0.0
      %972 = vmatpush1.msra.mxu0 0.0
      %973 = vmatprep.subr.mxu0 0.0
      %974 = vmatpush1.msra.mxu0 0.0
      %975 = vmatprep.subr.mxu0 0.0
      %976 = vmatpush1.msra.mxu0 0.0
      %977 = vmatprep.subr.mxu0 0.0
      %978 = vmatpush1.msra.mxu0 0.0
      %979 = vmatprep.subr.mxu0 0.0
      %980 = vmatpush1.msra.mxu0 0.0
      %981 = vmatprep.subr.mxu0 0.0
      %982 = vmatpush1.msra.mxu0 0.0
      %983 = vmatprep.subr.mxu0 0.0
      %984 = vmatpush1.msra.mxu0 0.0
      %985 = vmatprep.subr.mxu0 0.0
      %986 = vmatpush1.msra.mxu0 0.0
      %987 = vmatprep.subr.mxu0 0.0
      %988 = vmatpush1.msra.mxu0 0.0
      %989 = vmatprep.subr.mxu0 0.0
      %990 = vmatpush1.msra.mxu0 0.0
      %991 = vmatprep.mubr.f32.mxu0 0.0
      %v992 = vand.u32 %v736, 4294901760
      %v993 = vsub.f32 %v736, %v992
      %994 = vmatmul.mubr.f32.gmra.mrb[0].mxu0 %v993
      %v995 = vpop.f32.mrb[0].mxu0
      %v996 = vadd.f32 %v912, %v995
      %v997 = vpop.f32.mrb[0].mxu0
      %v998 = vadd.f32 %v914, %v997
      %999 = vmatprep.mubr.f32.mxu0 0.0
      %v1000 = vand.u32 %v739, 4294901760
      %v1001 = vsub.f32 %v739, %v1000
      %1002 = vmatmul.mubr.f32.gmra.mrb[0].mxu0 %v1001
      %v1003 = vpop.f32.mrb[0].mxu0
      %v1004 = vadd.f32 %v919, %v1003
      %v1005 = vpop.f32.mrb[0].mxu0
      %v1006 = vadd.f32 %v921, %v1005
      %1007 = vdwg.mxu0
      %v1008 = vand.u32 %v743, 4294901760
      %1009 = vmatprep.subr.mxu0 %v1008
      %v1010 = vand.u32 %v741, 4294901760
      %1011 = vmatpush1.msra.mxu0 %v1010
      %1012 = vmatprep.subr.mxu0 0.0
      %1013 = vmatpush1.msra.mxu0 0.0
      %1014 = vmatprep.subr.mxu0 0.0
      %1015 = vmatpush1.msra.mxu0 0.0
      %1016 = vmatprep.subr.mxu0 0.0
      %1017 = vmatpush1.msra.mxu0 0.0
      %1018 = vmatprep.subr.mxu0 0.0
      %1019 = vmatpush1.msra.mxu0 0.0
      %1020 = vmatprep.subr.mxu0 0.0
      %1021 = vmatpush1.msra.mxu0 0.0
      %1022 = vmatprep.subr.mxu0 0.0
      %1023 = vmatpush1.msra.mxu0 0.0
      %1024 = vmatprep.subr.mxu0 0.0
      %1025 = vmatpush1.msra.mxu0 0.0
      %1026 = vmatprep.subr.mxu0 0.0
      %1027 = vmatpush1.msra.mxu0 0.0
      %1028 = vmatprep.subr.mxu0 0.0
      %1029 = vmatpush1.msra.mxu0 0.0
      %1030 = vmatprep.subr.mxu0 0.0
      %1031 = vmatpush1.msra.mxu0 0.0
      %1032 = vmatprep.subr.mxu0 0.0
      %1033 = vmatpush1.msra.mxu0 0.0
      %1034 = vmatprep.subr.mxu0 0.0
      %1035 = vmatpush1.msra.mxu0 0.0
      %1036 = vmatprep.subr.mxu0 0.0
      %1037 = vmatpush1.msra.mxu0 0.0
      %1038 = vmatprep.subr.mxu0 0.0
      %1039 = vmatpush1.msra.mxu0 0.0
      %1040 = vmatprep.subr.mxu0 0.0
      %1041 = vmatpush1.msra.mxu0 0.0
      %1042 = vmatprep.subr.mxu0 0.0
      %1043 = vmatpush1.msra.mxu0 0.0
      %1044 = vmatprep.subr.mxu0 0.0
      %1045 = vmatpush1.msra.mxu0 0.0
      %1046 = vmatprep.subr.mxu0 0.0
      %1047 = vmatpush1.msra.mxu0 0.0
      %1048 = vmatprep.subr.mxu0 0.0
      %1049 = vmatpush1.msra.mxu0 0.0
      %1050 = vmatprep.subr.mxu0 0.0
      %1051 = vmatpush1.msra.mxu0 0.0
      %1052 = vmatprep.subr.mxu0 0.0
      %1053 = vmatpush1.msra.mxu0 0.0
      %1054 = vmatprep.subr.mxu0 0.0
      %1055 = vmatpush1.msra.mxu0 0.0
      %1056 = vmatprep.subr.mxu0 0.0
      %1057 = vmatpush1.msra.mxu0 0.0
      %1058 = vmatprep.subr.mxu0 0.0
      %1059 = vmatpush1.msra.mxu0 0.0
      %1060 = vmatprep.subr.mxu0 0.0
      %1061 = vmatpush1.msra.mxu0 0.0
      %1062 = vmatprep.subr.mxu0 0.0
      %1063 = vmatpush1.msra.mxu0 0.0
      %1064 = vmatprep.subr.mxu0 0.0
      %1065 = vmatpush1.msra.mxu0 0.0
      %1066 = vmatprep.subr.mxu0 0.0
      %1067 = vmatpush1.msra.mxu0 0.0
      %1068 = vmatprep.subr.mxu0 0.0
      %1069 = vmatpush1.msra.mxu0 0.0
      %1070 = vmatprep.subr.mxu0 0.0
      %1071 = vmatpush1.msra.mxu0 0.0
      %1072 = vmatprep.subr.mxu0 0.0
      %1073 = vmatpush1.msra.mxu0 0.0
      %1074 = vmatprep.mubr.f32.mxu0 0.0
      %v1075 = vand.u32 %v736, 4294901760
      %v1076 = vsub.f32 %v736, %v1075
      %v1077 = vand.u32 %v1076, 4294901760
      %1078 = vmatmul.mubr.f32.gmra.mrb[0].mxu0 %v1077
      %v1079 = vpop.f32.mrb[0].mxu0
      %v1080 = vadd.f32 %v996, %v1079
      %v1081 = vpop.f32.mrb[0].mxu0
      %v1082 = vadd.f32 %v998, %v1081
      %1083 = vmatprep.mubr.f32.mxu0 0.0
      %v1084 = vand.u32 %v739, 4294901760
      %v1085 = vsub.f32 %v739, %v1084
      %v1086 = vand.u32 %v1085, 4294901760
      %1087 = vmatmul.mubr.f32.gmra.mrb[0].mxu0 %v1086
      %v1088 = vpop.f32.mrb[0].mxu0
      %v1089 = vadd.f32 %v1004, %v1088
      %v1090 = vpop.f32.mrb[0].mxu0
      %v1091 = vadd.f32 %v1006, %v1090
      %1092 = vdwg.mxu0
      %v1093 = vand.u32 %v743, 4294901760
      %v1094 = vsub.f32 %v743, %v1093
      %v1095 = vand.u32 %v1094, 4294901760
      %1096 = vmatprep.subr.mxu0 %v1095
      %v1097 = vand.u32 %v741, 4294901760
      %v1098 = vsub.f32 %v741, %v1097
      %v1099 = vand.u32 %v1098, 4294901760
      %1100 = vmatpush1.msra.mxu0 %v1099
      %1101 = vmatprep.subr.mxu0 0.0
      %1102 = vmatpush1.msra.mxu0 0.0
      %1103 = vmatprep.subr.mxu0 0.0
      %1104 = vmatpush1.msra.mxu0 0.0
      %1105 = vmatprep.subr.mxu0 0.0
      %1106 = vmatpush1.msra.mxu0 0.0
      %1107 = vmatprep.subr.mxu0 0.0
      %1108 = vmatpush1.msra.mxu0 0.0
      %1109 = vmatprep.subr.mxu0 0.0
      %1110 = vmatpush1.msra.mxu0 0.0
      %1111 = vmatprep.subr.mxu0 0.0
      %1112 = vmatpush1.msra.mxu0 0.0
      %1113 = vmatprep.subr.mxu0 0.0
      %1114 = vmatpush1.msra.mxu0 0.0
      %1115 = vmatprep.subr.mxu0 0.0
      %1116 = vmatpush1.msra.mxu0 0.0
      %1117 = vmatprep.subr.mxu0 0.0
      %1118 = vmatpush1.msra.mxu0 0.0
      %1119 = vmatprep.subr.mxu0 0.0
      %1120 = vmatpush1.msra.mxu0 0.0
      %1121 = vmatprep.subr.mxu0 0.0
      %1122 = vmatpush1.msra.mxu0 0.0
      %1123 = vmatprep.subr.mxu0 0.0
      %1124 = vmatpush1.msra.mxu0 0.0
      %1125 = vmatprep.subr.mxu0 0.0
      %1126 = vmatpush1.msra.mxu0 0.0
      %1127 = vmatprep.subr.mxu0 0.0
      %1128 = vmatpush1.msra.mxu0 0.0
      %1129 = vmatprep.subr.mxu0 0.0
      %1130 = vmatpush1.msra.mxu0 0.0
      %1131 = vmatprep.subr.mxu0 0.0
      %1132 = vmatpush1.msra.mxu0 0.0
      %1133 = vmatprep.subr.mxu0 0.0
      %1134 = vmatpush1.msra.mxu0 0.0
      %1135 = vmatprep.subr.mxu0 0.0
      %1136 = vmatpush1.msra.mxu0 0.0
      %1137 = vmatprep.subr.mxu0 0.0
      %1138 = vmatpush1.msra.mxu0 0.0
      %1139 = vmatprep.subr.mxu0 0.0
      %1140 = vmatpush1.msra.mxu0 0.0
      %1141 = vmatprep.subr.mxu0 0.0
      %1142 = vmatpush1.msra.mxu0 0.0
      %1143 = vmatprep.subr.mxu0 0.0
      %1144 = vmatpush1.msra.mxu0 0.0
      %1145 = vmatprep.subr.mxu0 0.0
      %1146 = vmatpush1.msra.mxu0 0.0
      %1147 = vmatprep.subr.mxu0 0.0
      %1148 = vmatpush1.msra.mxu0 0.0
      %1149 = vmatprep.subr.mxu0 0.0
      %1150 = vmatpush1.msra.mxu0 0.0
      %1151 = vmatprep.subr.mxu0 0.0
      %1152 = vmatpush1.msra.mxu0 0.0
      %1153 = vmatprep.subr.mxu0 0.0
      %1154 = vmatpush1.msra.mxu0 0.0
      %1155 = vmatprep.subr.mxu0 0.0
      %1156 = vmatpush1.msra.mxu0 0.0
      %1157 = vmatprep.subr.mxu0 0.0
      %1158 = vmatpush1.msra.mxu0 0.0
      %1159 = vmatprep.subr.mxu0 0.0
      %1160 = vmatpush1.msra.mxu0 0.0
      %1161 = vmatprep.subr.mxu0 0.0
      %1162 = vmatpush1.msra.mxu0 0.0
      %1163 = vmatprep.mubr.f32.mxu0 0.0
      %v1164 = vand.u32 %v736, 4294901760
      %1165 = vmatmul.mubr.f32.gmra.mrb[0].mxu0 %v1164
      %v1166 = vpop.f32.mrb[0].mxu0
      %v1167 = vadd.f32 %v1080, %v1166
      %v1168 = vpop.f32.mrb[0].mxu0
      %v1169 = vadd.f32 %v1082, %v1168
      %1170 = vmatprep.mubr.f32.mxu0 0.0
      %v1171 = vand.u32 %v739, 4294901760
      %1172 = vmatmul.mubr.f32.gmra.mrb[0].mxu0 %v1171
      %v1173 = vpop.f32.mrb[0].mxu0
      %v1174 = vadd.f32 %v1089, %v1173
      %v1175 = vpop.f32.mrb[0].mxu0
      %v1176 = vadd.f32 %v1091, %v1175
      %1177 = vdwg.mxu0
      %v1178 = vand.u32 %v743, 4294901760
      %1179 = vmatprep.subr.mxu0 %v1178
      %v1180 = vand.u32 %v741, 4294901760
      %1181 = vmatpush1.msra.mxu0 %v1180
      %1182 = vmatprep.subr.mxu0 0.0
      %1183 = vmatpush1.msra.mxu0 0.0
      %1184 = vmatprep.subr.mxu0 0.0
      %1185 = vmatpush1.msra.mxu0 0.0
      %1186 = vmatprep.subr.mxu0 0.0
      %1187 = vmatpush1.msra.mxu0 0.0
      %1188 = vmatprep.subr.mxu0 0.0
      %1189 = vmatpush1.msra.mxu0 0.0
      %1190 = vmatprep.subr.mxu0 0.0
      %1191 = vmatpush1.msra.mxu0 0.0
      %1192 = vmatprep.subr.mxu0 0.0
      %1193 = vmatpush1.msra.mxu0 0.0
      %1194 = vmatprep.subr.mxu0 0.0
      %1195 = vmatpush1.msra.mxu0 0.0
      %1196 = vmatprep.subr.mxu0 0.0
      %1197 = vmatpush1.msra.mxu0 0.0
      %1198 = vmatprep.subr.mxu0 0.0
      %1199 = vmatpush1.msra.mxu0 0.0
      %1200 = vmatprep.subr.mxu0 0.0
      %1201 = vmatpush1.msra.mxu0 0.0
      %1202 = vmatprep.subr.mxu0 0.0
      %1203 = vmatpush1.msra.mxu0 0.0
      %1204 = vmatprep.subr.mxu0 0.0
      %1205 = vmatpush1.msra.mxu0 0.0
      %1206 = vmatprep.subr.mxu0 0.0
      %1207 = vmatpush1.msra.mxu0 0.0
      %1208 = vmatprep.subr.mxu0 0.0
      %1209 = vmatpush1.msra.mxu0 0.0
      %1210 = vmatprep.subr.mxu0 0.0
      %1211 = vmatpush1.msra.mxu0 0.0
      %1212 = vmatprep.subr.mxu0 0.0
      %1213 = vmatpush1.msra.mxu0 0.0
      %1214 = vmatprep.subr.mxu0 0.0
      %1215 = vmatpush1.msra.mxu0 0.0
      %1216 = vmatprep.subr.mxu0 0.0
      %1217 = vmatpush1.msra.mxu0 0.0
      %1218 = vmatprep.subr.mxu0 0.0
      %1219 = vmatpush1.msra.mxu0 0.0
      %1220 = vmatprep.subr.mxu0 0.0
      %1221 = vmatpush1.msra.mxu0 0.0
      %1222 = vmatprep.subr.mxu0 0.0
      %1223 = vmatpush1.msra.mxu0 0.0
      %1224 = vmatprep.subr.mxu0 0.0
      %1225 = vmatpush1.msra.mxu0 0.0
      %1226 = vmatprep.subr.mxu0 0.0
      %1227 = vmatpush1.msra.mxu0 0.0
      %1228 = vmatprep.subr.mxu0 0.0
      %1229 = vmatpush1.msra.mxu0 0.0
      %1230 = vmatprep.subr.mxu0 0.0
      %1231 = vmatpush1.msra.mxu0 0.0
      %1232 = vmatprep.subr.mxu0 0.0
      %1233 = vmatpush1.msra.mxu0 0.0
      %1234 = vmatprep.subr.mxu0 0.0
      %1235 = vmatpush1.msra.mxu0 0.0
      %1236 = vmatprep.subr.mxu0 0.0
      %1237 = vmatpush1.msra.mxu0 0.0
      %1238 = vmatprep.subr.mxu0 0.0
      %1239 = vmatpush1.msra.mxu0 0.0
      %1240 = vmatprep.subr.mxu0 0.0
      %1241 = vmatpush1.msra.mxu0 0.0
      %1242 = vmatprep.subr.mxu0 0.0
      %1243 = vmatpush1.msra.mxu0 0.0
      %1244 = vmatprep.mubr.f32.mxu0 0.0
      %v1245 = vand.u32 %v736, 4294901760
      %1246 = vmatmul.mubr.f32.gmra.mrb[0].mxu0 %v1245
      %v1247 = vpop.f32.mrb[0].mxu0
      %v1248 = vadd.f32 %v1167, %v1247
      %v1249 = vpop.f32.mrb[0].mxu0
      %v1250 = vadd.f32 %v1169, %v1249
      %1251 = vmatprep.mubr.f32.mxu0 0.0
      %v1252 = vand.u32 %v739, 4294901760
      %1253 = vmatmul.mubr.f32.gmra.mrb[0].mxu0 %v1252
      %v1254 = vpop.f32.mrb[0].mxu0
      %v1255 = vadd.f32 %v1174, %v1254
      %v1256 = vpop.f32.mrb[0].mxu0
      %v1257 = vadd.f32 %v1176, %v1256
      %1258 = vdwg.mxu0
      %v1259 = vld [vmem:[%s3] sm:$0xff]
      %v1260 = vld [vmem:[%s3 + $0x8] sm:$0xff]
      %1262 = vset.pattern.permute.xlu0 0
      %1263 = vperm.xlu0 %1262, %v1259
      %v1264 = vpop.permute.xlu0 %1263
      %1267 = vset.pattern.permute.xlu0 0
      %1268 = vperm.xlu0 %1267, %v1260
      %v1269 = vpop.permute.xlu0 %1268
      %v1271 = vadd.f32 %v1248, %v1264
      %v1272 = vadd.f32 %v1250, %v1264
      %v1273 = vadd.f32 %v1255, %v1269
      %v1274 = vadd.f32 %v1257, %v1269
      %v1275 = vmul.f32 %v1271, 1.442695
      %v1276 = vpow.pop %v1275
      %v1277 = vmul.f32 %v1272, 1.442695
      %v1278 = vpow.pop %v1277
      %v1279 = vmul.f32 %v1276, %v1273
      %v1280 = vmul.f32 %v1278, %v1274
      %v1281 = vrot.slane %v1279, 4
      %v1282 = vadd.f32 %v1279, %v1281
      %v1283 = vrot.slane %v1282, 2
      %v1284 = vadd.f32 %v1282, %v1283
      %v1285 = vrot.slane %v1284, 1
      %v1286 = vadd.f32 %v1284, %v1285
      %v1287 = vrot.slane %v1280, 4
      %v1288 = vadd.f32 %v1280, %v1287
      %v1289 = vrot.slane %v1288, 2
      %v1290 = vadd.f32 %v1288, %v1289
      %v1291 = vrot.slane %v1290, 1
      %v1292 = vadd.f32 %v1290, %v1291
      %v1293 = vrot.slane %v1276, 4
      %v1294 = vadd.f32 %v1276, %v1293
      %v1295 = vrot.slane %v1294, 2
      %v1296 = vadd.f32 %v1294, %v1295
      %v1297 = vrot.slane %v1296, 1
      %v1298 = vadd.f32 %v1296, %v1297
      %v1299 = vrot.slane %v1278, 4
      %v1300 = vadd.f32 %v1278, %v1299
      %v1301 = vrot.slane %v1300, 2
      %v1302 = vadd.f32 %v1300, %v1301
      %v1303 = vrot.slane %v1302, 1
      %v1304 = vadd.f32 %v1302, %v1303
      %v1305 = vadd.f32 %v1298, 1e-08
      %v1306 = vadd.f32 %v1304, 1e-08
      %v1307 = vrcp.pop %v1305
      %v1308 = vrcp.pop %v1306
      %v1309 = vmul.f32 %v1286, %v1307
      %v1310 = vmul.f32 %v1292, %v1308
      %v1313 = vcombine.low %v1309, %v1310
      %v1315 = vunpack.c.l.s4 1966171168
      %v1316 = vunpack.c.0.s8 %v1315
      %v1317 = vlaneseq
      %v1318 = vshrl.u32 %v1317, 7
      %v1319 = vsub.s32 %v1316, %v1318
      %v1320 = vrot.slane %v1313, %v1319
      %v1322 = vunpack.c.l.s4 1966171168
      %v1323 = vunpack.c.0.s8 %v1322
      %v1324 = vlaneseq
      %v1325 = vshrl.u32 %v1324, 7
      %v1326 = vsub.s32 %v1323, %v1325
      %v1327 = vrot.slane %v1320, %v1326
      %v1329 = vlaneseq
      %vm1330 = vcmp.ge.s32.totalorder %v1329, 0
      %vm1331 = vcmp.lt.s32.totalorder %v1329, 256
      %vm1332 = vmand %vm1330, %vm1331
      %1333 = vst.msk [vmem:[%s197] sm:$0x3] %vm1332, %v1327
      %s1334 = smul.u32 2, %s15
      %p1335 = scmp.lt.s32.totalorder %s1334, 3
      %s1336 = scalar_select %p1335, %s1334, 3
      %s1337 = scalar_lea.vmem %s4, %s1336
      // Predicated region
      $region37: #{anfis_forward.1} parent=35 // pred_check
        %p1338 = pneg %p122
      $region38: #{anfis_forward.1} parent=35 // pred_check_branch
        %1340 = sbr.rel (%p1338) target = $region40
      $region39: #{anfis_forward.1} parent=35 // pred_region
        %s1341 = smul.u32 2, %s15
      $region40: #{anfis_forward.1} parent=35 // pred_fallthru
        _
    $region36: #{anfis_forward.1} parent=5 // pred_fallthru
      _
    %p1342 = scmp.le.s32.totalorder 2, %s10
    // Predicated region
    $region41: #{anfis_forward.1} parent=5 // pred_check
      %p1343 = pneg %p1342
    $region42: #{anfis_forward.1} parent=5 // pred_check_branch
      %1345 = sbr.rel (%p1343) target = $region44
    $region43: #{anfis_forward.1} parent=5 // pred_region
      %s1346 = ssub.s32 %s10, 2
      // Predicated region
      $region45: #{anfis_forward.1} parent=43 // pred_check
        %p1347 = pneg %p128
      $region46: #{anfis_forward.1} parent=43 // pred_check_branch
        %1349 = sbr.rel (%p1347) target = $region48
      $region47: #{anfis_forward.1} parent=43 // pred_region
        %s1350 = smul.u32 2, %s16
        %p1351 = scmp.lt.s32.totalorder %s1350, 3
        %s1352 = scalar_select %p1351, %s1350, 3
        %s1353 = scalar_lea.vmem %s4, %s1352
      $region48: #{anfis_forward.1} parent=43 // pred_fallthru
        _
    $region44: #{anfis_forward.1} parent=5 // pred_fallthru
      _
  $region6: #{anfis_forward.1} parent=0 // loop_footer
    %s14 = sadd.s32 1, %s10
  $region7: #{anfis_forward.1} parent=0 // loop_footer_branch
    %9 = sbr.rel target = $region3
  $region8: #{anfis_forward.1} parent=0 // loop_exit
    _

</llo_original>
